<compile_context>
chip_gen: v7x
topology: tpu7x:2x2x1
jax: 0.10.0
libtpu: 0.0.40
codegen_flags: <defaults>
</compile_context>

<pallas_src>
import functools

import jax
import jax.numpy as jnp
from jax.experimental import pallas as pl
from jax.experimental.pallas import tpu as pltpu


# Weight slab (bf16, (128, 32), zero-padded):
#   rows   0:54  = W1 (54, 32)
#   rows  64:96  = W2 (32, 16) in cols 0:16
#   rows  96:112 = W3 (16,  8) in cols 0:8
# Bias slab (f32, (8, 32), zero-padded):
#   row 0 = b1(32)   row 1 = b2(16)   row 2 = b3(8)   row 3 = b4(1)   row 4 = W4^T(8)
# Zero padding is benign: padded hidden columns come out of ReLU as exactly 0
# and the corresponding (zero) weight rows/cols contribute nothing downstream.


def _mlp_kernel(x_ref, w_ref, b_ref, o_ref, *, act_dtype):
    # Cast the streamed f32 tile to bf16 in-kernel (review item 1): HBM moves
    # 4 B/elem exactly once, the cast is a cheap VPU pass over the tile.
    x = x_ref[...].astype(jnp.bfloat16)                                 # (TB, 54)

    def bias_relu(h_f32, b_row_f32):
        # bf16 on v6e/v7x (packed VALU), f32 on v5e (no bf16 VALU).
        h = h_f32.astype(act_dtype) + b_row_f32.astype(act_dtype)
        return jnp.maximum(h, 0.0)

    # Layer 1: 54 -> 32 (MXU, f32 accumulation).  K=54 left unpadded on purpose.
    h = jnp.dot(x, w_ref[0:54, :], preferred_element_type=jnp.float32)
    h = bias_relu(h, b_ref[0:1, :])                                     # (TB, 32)

    # Layer 2: 32 -> 16, computed at padded width 32 (padded cols stay 0).
    h = jnp.dot(h.astype(jnp.bfloat16), w_ref[64:96, :],
                preferred_element_type=jnp.float32)
    h = bias_relu(h, b_ref[1:2, :])

    # Layer 3: 16 -> 8, padded width 32.
    h = jnp.dot(h.astype(jnp.bfloat16), w_ref[96:128, :],
                preferred_element_type=jnp.float32)
    h = bias_relu(h, b_ref[2:3, :])                                     # cols 8: == 0

    # Layer 4: 8 -> 1 on VPU/XLU (idle slots) instead of an N=1 MXU matmul.
    w4_row = b_ref[4:5, :]                                              # (1, 32) f32, zero-padded W4^T
    out = jnp.sum(h.astype(jnp.float32) * w4_row, axis=-1, keepdims=True) + b_ref[3:4, 0:1]
    o_ref[...] = out.astype(o_ref.dtype)


def pack_params(params):
    """Pack 8 tiny parameter tensors into 2 VMEM-resident slabs (one-time cost)."""
    wslab = jnp.zeros((128, 32), jnp.bfloat16)
    wslab = wslab.at[0:54, 0:32].set(params["w1"].astype(jnp.bfloat16))
    wslab = wslab.at[64:96, 0:16].set(params["w2"].astype(jnp.bfloat16))
    wslab = wslab.at[96:112, 0:8].set(params["w3"].astype(jnp.bfloat16))

    bslab = jnp.zeros((8, 32), jnp.float32)
    bslab = bslab.at[0, 0:32].set(params["b1"].reshape(32))
    bslab = bslab.at[1, 0:16].set(params["b2"].reshape(16))
    bslab = bslab.at[2, 0:8].set(params["b3"].reshape(8))
    bslab = bslab.at[3, 0:1].set(params["b4"].reshape(1))
    bslab = bslab.at[4, 0:8].set(params["w4"].reshape(8))
    return wslab, bslab


def _round_up(n, m):
    return ((n + m - 1) // m) * m


def default_config():
    """Per-generation knobs: bf16 bias/ReLU only on chips with a bf16 VALU
    (v6e/v7x), and a VMEM budget that respects v7x's 64 MiB/TC."""
    try:
        kind = jax.devices()[0].device_kind.lower()
    except Exception:
        kind = ""
    old_gen = any(v in kind for v in ("v2", "v3", "v4", "v5"))
    act_dtype = jnp.float32 if old_gen else jnp.bfloat16
    vmem_limit_bytes = (48 if "v7" in kind else 96) * 1024 * 1024
    return act_dtype, vmem_limit_bytes


@functools.partial(jax.jit, static_argnames=("tb", "act_dtype", "vmem_limit_bytes"))
def _linear_net_forward_jit(x, wslab, bslab, *, tb, act_dtype, vmem_limit_bytes):
    x = x.reshape(x.shape[0], -1)                   # nn.Flatten()
    if x.dtype != jnp.float32:
        x = x.astype(jnp.float32)
    B, F = x.shape
    assert F == 54, F

    # Batch tile: multiple of 16 (bf16 sublane packing), clamped to the
    # rounded-up batch so tiny batches don't allocate huge VMEM windows.
    tb = max(16, _round_up(min(tb, _round_up(B, 16)), 16))
    grid = (pl.cdiv(B, tb),)                        # ragged last block handled by Pallas

    kernel = functools.partial(_mlp_kernel, act_dtype=act_dtype)
    return pl.pallas_call(
        kernel,
        out_shape=jax.ShapeDtypeStruct((B, 1), jnp.float32),
        grid=grid,
        in_specs=[
            # x streamed as f32 (no wrapper cast/pad).  Pipeline depth left at
            # the default 2; bump to pipeline_mode=pl.Buffered(3) only if a
            # trace shows exposed DMA at step boundaries.
            pl.BlockSpec((tb, 54), lambda i: (i, 0)),
            # Weight / bias slabs: constant index_map -> fetched once, VMEM-resident.
            pl.BlockSpec((128, 32), lambda i: (0, 0)),
            pl.BlockSpec((8, 32), lambda i: (0, 0)),
        ],
        out_specs=pl.BlockSpec((tb, 1), lambda i: (i, 0)),
        compiler_params=pltpu.CompilerParams(
            dimension_semantics=("parallel",),      # TODO(synk): CORE_PARALLEL on v7x if needed
            vmem_limit_bytes=vmem_limit_bytes,
        ),
    )(x, wslab, bslab)


def linear_net_forward(x, wslab, bslab, *, tb=8192, act_dtype=None, vmem_limit_bytes=None):
    """x: (B, 54) or (B, 6, 9) float.  Returns (B, 1) float32."""
    if act_dtype is None or vmem_limit_bytes is None:
        auto_act, auto_vmem = default_config()
        if act_dtype is None:
            act_dtype = auto_act
        if vmem_limit_bytes is None:
            vmem_limit_bytes = auto_vmem
    return _linear_net_forward_jit(x, wslab, bslab, tb=tb, act_dtype=act_dtype,
                                   vmem_limit_bytes=vmem_limit_bytes)


def init_params(key):
    """Deterministic PyTorch-style init: U(-1/sqrt(fan_in), 1/sqrt(fan_in))."""
    dims = [(54, 32), (32, 16), (16, 8), (8, 1)]
    params = {}
    keys = jax.random.split(key, 2 * len(dims))
    for i, (fin, fout) in enumerate(dims):
        bound = 1.0 / jnp.sqrt(float(fin))
        params[f"w{i + 1}"] = jax.random.uniform(keys[2 * i], (fin, fout),
                                                 jnp.float32, -bound, bound)
        params[f"b{i + 1}"] = jax.random.uniform(keys[2 * i + 1], (1, fout),
                                                 jnp.float32, -bound, bound)
    return params


def reference_forward(x, params, act_dtype=jnp.bfloat16):
    """Pure-JAX reference mirroring the kernel dtype strategy
    (bf16 matmul inputs, f32 accumulation, bias+ReLU in act_dtype)."""
    bf = jnp.bfloat16
    x = x.reshape(x.shape[0], -1).astype(jnp.float32)

    def bias_relu(h, b):
        return jnp.maximum(h.astype(act_dtype) + b.astype(act_dtype), 0.0)

    h = bias_relu(jnp.dot(x.astype(bf), params["w1"].astype(bf),
                          preferred_element_type=jnp.float32), params["b1"])
    h = bias_relu(jnp.dot(h.astype(bf), params["w2"].astype(bf),
                          preferred_element_type=jnp.float32), params["b2"])
    h = bias_relu(jnp.dot(h.astype(bf), params["w3"].astype(bf),
                          preferred_element_type=jnp.float32), params["b3"])
    return jnp.dot(h.astype(jnp.float32), params["w4"],
                   preferred_element_type=jnp.float32) + params["b4"]


if __name__ == "__main__":
    key = jax.random.PRNGKey(0)
    k_params, k_x1, k_x2 = jax.random.split(key, 3)

    params = init_params(k_params)
    wslab, bslab = pack_params(params)
    act_dtype, vmem_limit = default_config()

    # Small input consistent with the module: nn.Flatten() of (6, 9) -> 54 features.
    B = 8
    x = jax.random.normal(k_x1, (B, 6, 9), jnp.float32)
    out = jax.block_until_ready(
        linear_net_forward(x, wslab, bslab, act_dtype=act_dtype,
                           vmem_limit_bytes=vmem_limit))
    ref = reference_forward(x, params, act_dtype)
    assert out.shape == (B, 1), out.shape
    assert jnp.allclose(out, ref, atol=5e-3, rtol=5e-3), (out, ref)

    # Second check: multi-step grid + ragged last block (200 = 3*64 + 8), no padding.
    B2 = 200
    x2 = jax.random.normal(k_x2, (B2, 54), jnp.float32)
    out2 = jax.block_until_ready(
        linear_net_forward(x2, wslab, bslab, tb=64, act_dtype=act_dtype,
                           vmem_limit_bytes=vmem_limit))
    ref2 = reference_forward(x2, params, act_dtype)
    assert out2.shape == (B2, 1), out2.shape
    assert jnp.allclose(out2, ref2, atol=5e-3, rtol=5e-3), (out2, ref2)

    print("KERNEL_OK")
</pallas_src>

<mosaic_0001>
module attributes {stable_mosaic.version = 11 : i64} {
  func.func @_mlp_kernel(%arg0: i32, %arg1: memref<16x54xf32, #tpu.memory_space<vmem>>, %arg2: memref<128x32xbf16, #tpu.memory_space<vmem>>, %arg3: memref<8x32xf32, #tpu.memory_space<vmem>>, %arg4: memref<16x1xf32, #tpu.memory_space<vmem>>) attributes {dimension_semantics = [#tpu.dimension_semantics<parallel>], iteration_bounds = array<i64: 1>, scalar_prefetch = 0 : i64, scratch_operands = 0 : i64, tpu.core_type = #tpu.core_type<tc>, window_params = [{transform_indices = @transform_0, window_bounds = array<i64: 16, 54>}, {pipeline_mode = #tpu.pipeline_mode<synchronous>, transform_indices = @transform_1, window_bounds = array<i64: 128, 32>}, {pipeline_mode = #tpu.pipeline_mode<synchronous>, transform_indices = @transform_2, window_bounds = array<i64: 8, 32>}, {transform_indices = @transform_3, window_bounds = array<i64: 16, 1>}]} {
    %c0 = arith.constant 0 : index
    %c0_0 = arith.constant 0 : index
    %0 = vector.load %arg1[%c0, %c0_0] : memref<16x54xf32, #tpu.memory_space<vmem>>, vector<16x54xf32>
    %1 = arith.truncf %0 : vector<16x54xf32> to vector<16x54xbf16>
    %c0_1 = arith.constant 0 : index
    %c0_2 = arith.constant 0 : index
    %2 = vector.load %arg2[%c0_1, %c0_2] : memref<128x32xbf16, #tpu.memory_space<vmem>>, vector<54x32xbf16>
    %cst = arith.constant dense<0.000000e+00> : vector<16x32xf32>
    %3 = tpu.matmul %1, %2, %cst {dimension_numbers = #tpu.dot_dimension_numbers<[1], [0], [0], [1], [0, 0, 1, 1], [], []>} : vector<16x54xbf16>, vector<54x32xbf16>, vector<16x32xf32> -> vector<16x32xf32>
    %c0_3 = arith.constant 0 : index
    %c0_4 = arith.constant 0 : index
    %4 = vector.load %arg3[%c0_3, %c0_4] : memref<8x32xf32, #tpu.memory_space<vmem>>, vector<1x32xf32>
    %5 = arith.truncf %3 : vector<16x32xf32> to vector<16x32xbf16>
    %6 = arith.truncf %4 : vector<1x32xf32> to vector<1x32xbf16>
    %7 = vector.broadcast %6 : vector<1x32xbf16> to vector<16x32xbf16>
    %8 = arith.addf %5, %7 : vector<16x32xbf16>
    %cst_5 = arith.constant 0.000000e+00 : bf16
    %9 = vector.broadcast %cst_5 : bf16 to vector<16x32xbf16>
    %10 = arith.maximumf %8, %9 : vector<16x32xbf16>
    %c64 = arith.constant 64 : index
    %c0_6 = arith.constant 0 : index
    %11 = vector.load %arg2[%c64, %c0_6] : memref<128x32xbf16, #tpu.memory_space<vmem>>, vector<32x32xbf16>
    %cst_7 = arith.constant dense<0.000000e+00> : vector<16x32xf32>
    %12 = tpu.matmul %10, %11, %cst_7 {dimension_numbers = #tpu.dot_dimension_numbers<[1], [0], [0], [1], [0, 0, 1, 1], [], []>} : vector<16x32xbf16>, vector<32x32xbf16>, vector<16x32xf32> -> vector<16x32xf32>
    %c1 = arith.constant 1 : index
    %c0_8 = arith.constant 0 : index
    %13 = vector.load %arg3[%c1, %c0_8] : memref<8x32xf32, #tpu.memory_space<vmem>>, vector<1x32xf32>
    %14 = arith.truncf %12 : vector<16x32xf32> to vector<16x32xbf16>
    %15 = arith.truncf %13 : vector<1x32xf32> to vector<1x32xbf16>
    %16 = vector.broadcast %15 : vector<1x32xbf16> to vector<16x32xbf16>
    %17 = arith.addf %14, %16 : vector<16x32xbf16>
    %cst_9 = arith.constant 0.000000e+00 : bf16
    %18 = vector.broadcast %cst_9 : bf16 to vector<16x32xbf16>
    %19 = arith.maximumf %17, %18 : vector<16x32xbf16>
    %c96 = arith.constant 96 : index
    %c0_10 = arith.constant 0 : index
    %20 = vector.load %arg2[%c96, %c0_10] : memref<128x32xbf16, #tpu.memory_space<vmem>>, vector<32x32xbf16>
    %cst_11 = arith.constant dense<0.000000e+00> : vector<16x32xf32>
    %21 = tpu.matmul %19, %20, %cst_11 {dimension_numbers = #tpu.dot_dimension_numbers<[1], [0], [0], [1], [0, 0, 1, 1], [], []>} : vector<16x32xbf16>, vector<32x32xbf16>, vector<16x32xf32> -> vector<16x32xf32>
    %c2 = arith.constant 2 : index
    %c0_12 = arith.constant 0 : index
    %22 = vector.load %arg3[%c2, %c0_12] : memref<8x32xf32, #tpu.memory_space<vmem>>, vector<1x32xf32>
    %23 = arith.truncf %21 : vector<16x32xf32> to vector<16x32xbf16>
    %24 = arith.truncf %22 : vector<1x32xf32> to vector<1x32xbf16>
    %25 = vector.broadcast %24 : vector<1x32xbf16> to vector<16x32xbf16>
    %26 = arith.addf %23, %25 : vector<16x32xbf16>
    %cst_13 = arith.constant 0.000000e+00 : bf16
    %27 = vector.broadcast %cst_13 : bf16 to vector<16x32xbf16>
    %28 = arith.maximumf %26, %27 : vector<16x32xbf16>
    %c4 = arith.constant 4 : index
    %c0_14 = arith.constant 0 : index
    %29 = vector.load %arg3[%c4, %c0_14] : memref<8x32xf32, #tpu.memory_space<vmem>>, vector<1x32xf32>
    %30 = arith.extf %28 : vector<16x32xbf16> to vector<16x32xf32>
    %31 = vector.broadcast %29 : vector<1x32xf32> to vector<16x32xf32>
    %32 = arith.mulf %30, %31 : vector<16x32xf32>
    %cst_15 = arith.constant dense<0.000000e+00> : vector<16xf32>
    %33 = vector.multi_reduction <add>, %32, %cst_15 [1] : vector<16x32xf32> to vector<16xf32>
    %34 = vector.shape_cast %33 : vector<16xf32> to vector<16x1xf32>
    %c3 = arith.constant 3 : index
    %c0_16 = arith.constant 0 : index
    %35 = vector.load %arg3[%c3, %c0_16] : memref<8x32xf32, #tpu.memory_space<vmem>>, vector<1x1xf32>
    %36 = vector.broadcast %35 : vector<1x1xf32> to vector<16x1xf32>
    %37 = arith.addf %34, %36 : vector<16x1xf32>
    %c0_17 = arith.constant 0 : index
    %c0_18 = arith.constant 0 : index
    %38 = vector.load %arg4[%c0_17, %c0_18] : memref<16x1xf32, #tpu.memory_space<vmem>>, vector<16x1xf32>
    tpu.vector_store %arg4[%c0_17, %c0_18], %37 {strides = array<i32>} : memref<16x1xf32, #tpu.memory_space<vmem>>, vector<16x1xf32>,
    return
  }
  func.func @transform_0(%arg0: i32) -> (i32, i32) {
    %c0_i32 = arith.constant 0 : i32
    %c0_i32_0 = arith.constant 0 : i32
    return %arg0, %c0_i32 : i32, i32
  }
  func.func @transform_1(%arg0: i32) -> (i32, i32) {
    %c0_i32 = arith.constant 0 : i32
    %c0_i32_0 = arith.constant 0 : i32
    %c0_i32_1 = arith.constant 0 : i32
    return %c0_i32, %c0_i32_0 : i32, i32
  }
  func.func @transform_2(%arg0: i32) -> (i32, i32) {
    %c0_i32 = arith.constant 0 : i32
    %c0_i32_0 = arith.constant 0 : i32
    %c0_i32_1 = arith.constant 0 : i32
    return %c0_i32, %c0_i32_0 : i32, i32
  }
  func.func @transform_3(%arg0: i32) -> (i32, i32) {
    %c0_i32 = arith.constant 0 : i32
    %c0_i32_0 = arith.constant 0 : i32
    return %arg0, %c0_i32 : i32, i32
  }
}

</mosaic_0001>

<llo_original>
// kernel: _linear_net_forward_jit.1
$region0: #{_linear_net_forward_jit.1}
  #allocation0 [shape = 'u32[]', space=smem, size = 0x4, offset = 0x4, fixed_abs, tag = 'smem constant byte address 0x4 - core index']
  #allocation1 [shape = 'u32[144,128]{1,0:T(1,128)}', space=vmem, size = 0x12000, scoped, tag = 'internal scratch']
  %s0 = inlined_call_operand.hbm [shape: f32[8,54], index: 0, kind: input, shape index: {}]
  %s1 = inlined_call_operand.hbm [shape: bf16[128,32], index: 1, kind: input, shape index: {}]
  %s2 = inlined_call_operand.hbm [shape: f32[8,32], index: 2, kind: input, shape index: {}]
  %s3 = inlined_call_operand.hbm [shape: f32[8,1], index: 3, kind: output, shape index: {}]
  %s4 = sld [smem:[#allocation0]]
  $region34: #{_linear_net_forward_jit.1} parent=0
    _
  %s6 = ssub.s32 1, %s4
  %s7 = scalar_select 0, %s6, %s4
  $region1: #{_linear_net_forward_jit.1} parent=0
    #allocation2 [shape = 'u8[8192]{0}', space=vmem, size = 0x2000, scoped, tag = 'input window, operand 0, single buffered']
    #allocation3 [shape = 's32[1]{0}', space=sflag, size = 0x4, scoped, tag = 'scoped memory for _linear_net_forward_jit.1']
    #allocation4 [shape = 's32[1]{0}', space=sflag, size = 0x4, scoped, tag = 'scoped memory for _linear_net_forward_jit.1']
    #allocation5 [shape = 'u8[32768]{0}', space=vmem, size = 0x8000, scoped, tag = 'input window, operand 1, single buffered']
    #allocation6 [shape = 's32[1]{0}', space=sflag, size = 0x4, scoped, tag = 'scoped memory for _linear_net_forward_jit.1']
    #allocation7 [shape = 'u8[4096]{0}', space=vmem, size = 0x1000, scoped, tag = 'input window, operand 2, single buffered']
    #allocation8 [shape = 'u8[8192]{0}', space=vmem, size = 0x2000, scoped, tag = 'output window, operand 0, single buffered']
    %8 = vsyncpa [#allocation3], 0
    %9 = vsyncpa [#allocation6], 0
    %10 = vsyncpa [#allocation4], 0
    // Predicated region
    $region2: #{_linear_net_forward_jit.1} parent=1 // pred_check
      _
    $region3: #{_linear_net_forward_jit.1} parent=1 // pred_check_branch
      %12 = sbr.rel (0) target = $region5
    $region4: #{_linear_net_forward_jit.1} parent=1 // pred_region
      %s14 = ssub.s32 256, 128
      %15 = vsyncadd [#allocation3], %s14
      %s16 = sshll.u32 [#allocation2], 4
      %s17 = int_to_ptr.vmem [resolvable:$true] %s16
      %22 = dma.hbm_to_vmem [thread:$0]  %s0, 128, %s17, [#allocation3], 128, 128, 8
    $region5: #{_linear_net_forward_jit.1} parent=1 // pred_fallthru
      _
    // Predicated region
    $region6: #{_linear_net_forward_jit.1} parent=1 // pred_check
      _
    $region7: #{_linear_net_forward_jit.1} parent=1 // pred_check_branch
      %24 = sbr.rel (0) target = $region9
    $region8: #{_linear_net_forward_jit.1} parent=1 // pred_region
      %s26 = ssub.s32 1024, 1024
      %27 = vsyncadd [#allocation6], %s26
      %s28 = sshll.u32 [#allocation5], 4
      %s29 = int_to_ptr.vmem [resolvable:$true] %s28
      %34 = dma.hbm_to_vmem [thread:$0]  %s1, 1024, %s29, [#allocation6], 64, 64, 4
    $region9: #{_linear_net_forward_jit.1} parent=1 // pred_fallthru
      _
    // Predicated region
    $region10: #{_linear_net_forward_jit.1} parent=1 // pred_check
      _
    $region11: #{_linear_net_forward_jit.1} parent=1 // pred_check_branch
      %36 = sbr.rel (0) target = $region13
    $region12: #{_linear_net_forward_jit.1} parent=1 // pred_region
      %s38 = ssub.s32 128, 128
      %39 = vsyncadd [#allocation6], %s38
      %s41 = sshll.u32 [#allocation7], 4
      %s42 = int_to_ptr.vmem [resolvable:$true] %s41
      %44 = dma.hbm_to_vmem [thread:$0]  %s2, 128, %s42, [#allocation6]
    $region13: #{_linear_net_forward_jit.1} parent=1 // pred_fallthru
      _
    // Predicated region
    $region14: #{_linear_net_forward_jit.1} parent=1 // pred_check
      _
    $region15: #{_linear_net_forward_jit.1} parent=1 // pred_check_branch
      %46 = sbr.rel (0) target = $region17
    $region16: #{_linear_net_forward_jit.1} parent=1 // pred_region
      %47 = dma.done [#allocation3], 256
    $region17: #{_linear_net_forward_jit.1} parent=1 // pred_fallthru
      _
    // Predicated region
    $region18: #{_linear_net_forward_jit.1} parent=1 // pred_check
      _
    $region19: #{_linear_net_forward_jit.1} parent=1 // pred_check_branch
      %49 = sbr.rel (0) target = $region21
    $region20: #{_linear_net_forward_jit.1} parent=1 // pred_region
      %50 = dma.done [#allocation6], 1024
    $region21: #{_linear_net_forward_jit.1} parent=1 // pred_fallthru
      _
    // Predicated region
    $region22: #{_linear_net_forward_jit.1} parent=1 // pred_check
      _
    $region23: #{_linear_net_forward_jit.1} parent=1 // pred_check_branch
      %52 = sbr.rel (0) target = $region25
    $region24: #{_linear_net_forward_jit.1} parent=1 // pred_region
      %53 = dma.done [#allocation6], 128
    $region25: #{_linear_net_forward_jit.1} parent=1 // pred_fallthru
      _
    %v55 = vld [vmem:[#allocation2] sm:$0xff]
    %v56 = vld [vmem:[#allocation2 + $0x8] sm:$0xff]
    %v57 = vpack.c.bf16 %v56, %v55
    %v58 = vld [vmem:[#allocation5] sm:$0xf]
    %v59 = vld [vmem:[#allocation5 + $0x4] sm:$0xf]
    %v60 = vld [vmem:[#allocation5 + $0x8] sm:$0xf]
    %v61 = vld [vmem:[#allocation5 + $0xc] sm:$0xf]
    %v62 = vld [vmem:[#allocation5 + $0x10] sm:$0xf]
    %v63 = vld [vmem:[#allocation5 + $0x14] sm:$0xf]
    %v64 = vld [vmem:[#allocation5 + $0x18] sm:$0x7]
    %v72 = vunpack.c.l.b16 %v58
    %v73 = vunpack.c.l.b16 %v59
    %v74 = vunpack.c.l.b16 %v60
    %v75 = vunpack.c.l.b16 %v61
    %v76 = vunpack.c.l.b16 %v62
    %v77 = vunpack.c.l.b16 %v63
    %v78 = vunpack.c.l.b16 %v64
    %v79 = vpack.c.b16 %v73, %v72
    %v80 = vpack.c.b16 %v75, %v74
    %v81 = vpack.c.b16 %v77, %v76
    %v82 = vpack.c.b16 %v78, %v78
    %vm86 = vcmask 441344
    %v88 = vsel %vm86, %v57, 0
    %vm90 = vcmask 1042432
    %v92 = vsel %vm90, %v82, 0
    %94 = vmatprep.subr.bf16.mxu0 0
    %95 = vmatpush1.bf16.msra.mxu0 %v79
    %96 = vmatprep.subr.bf16.mxu0 0
    %97 = vmatpush1.bf16.msra.mxu0 %v80
    %98 = vmatprep.subr.bf16.mxu0 0
    %99 = vmatpush1.bf16.msra.mxu0 %v81
    %100 = vmatprep.subr.bf16.mxu0 0
    %101 = vmatpush1.bf16.msra.mxu0 %v92
    %102 = vmatprep.subr.bf16.mxu0 0
    %103 = vmatpush1.bf16.msra.mxu0 0
    %104 = vmatprep.subr.bf16.mxu0 0
    %105 = vmatpush1.bf16.msra.mxu0 0
    %106 = vmatprep.subr.bf16.mxu0 0
    %107 = vmatpush1.bf16.msra.mxu0 0
    %108 = vmatprep.subr.bf16.mxu0 0
    %109 = vmatpush1.bf16.msra.mxu0 0
    %110 = vmatprep.subr.bf16.mxu0 0
    %111 = vmatpush1.bf16.msra.mxu0 0
    %112 = vmatprep.subr.bf16.mxu0 0
    %113 = vmatpush1.bf16.msra.mxu0 0
    %114 = vmatprep.subr.bf16.mxu0 0
    %115 = vmatpush1.bf16.msra.mxu0 0
    %116 = vmatprep.subr.bf16.mxu0 0
    %117 = vmatpush1.bf16.msra.mxu0 0
    %118 = vmatprep.subr.bf16.mxu0 0
    %119 = vmatpush1.bf16.msra.mxu0 0
    %120 = vmatprep.subr.bf16.mxu0 0
    %121 = vmatpush1.bf16.msra.mxu0 0
    %122 = vmatprep.subr.bf16.mxu0 0
    %123 = vmatpush1.bf16.msra.mxu0 0
    %124 = vmatprep.subr.bf16.mxu0 0
    %125 = vmatpush1.bf16.msra.mxu0 0
    %126 = vmatprep.mubr.bf16.mxu0 0
    %127 = vmatmul.mubr.bf16.gmra.mrb[0].mxu0 %v88
    %v128 = vpop.f32.mrb[0].mxu0
    %v129 = vadd.f32 0.0, %v128
    %v130 = vpop.f32.mrb[0].mxu0
    %v131 = vpop.f32.mrb[0].mxu0
    %v132 = vadd.f32 0.0, %v131
    %v133 = vpop.f32.mrb[0].mxu0
    %134 = vdwg.mxu0
    %v135 = vld [vmem:[#allocation7] sm:$0x1]
    %v136 = vpack.c.bf16 %v132, %v129
    %v137 = vpack.c.bf16 %v135, %v135
    %v139 = vpack.i.b16 %v137, %v137
    %v141 = vlaneseq
    %v142 = vshrl.u32 %v141, 7
    %v143 = vsub.s32 0, %v142
    %v144 = vrot.slane %v139, %v143
    %v145 = vadd.bf16 %v136, %v144
    %v146 = vmax.bf16 %v145, 0
    %v147 = vld [vmem:[#allocation5 + $0x20] sm:$0xf]
    %v148 = vld [vmem:[#allocation5 + $0x24] sm:$0xf]
    %v149 = vld [vmem:[#allocation5 + $0x28] sm:$0xf]
    %v150 = vld [vmem:[#allocation5 + $0x2c] sm:$0xf]
    %v155 = vunpack.c.l.b16 %v147
    %v156 = vunpack.c.l.b16 %v148
    %v157 = vunpack.c.l.b16 %v149
    %v158 = vunpack.c.l.b16 %v150
    %v159 = vpack.c.b16 %v156, %v155
    %v160 = vpack.c.b16 %v158, %v157
    %vm163 = vcmask 261120
    %v165 = vsel %vm163, %v146, 0
    %167 = vmatprep.subr.bf16.mxu0 0
    %168 = vmatpush1.bf16.msra.mxu0 %v159
    %169 = vmatprep.subr.bf16.mxu0 0
    %170 = vmatpush1.bf16.msra.mxu0 %v160
    %171 = vmatprep.subr.bf16.mxu0 0
    %172 = vmatpush1.bf16.msra.mxu0 0
    %173 = vmatprep.subr.bf16.mxu0 0
    %174 = vmatpush1.bf16.msra.mxu0 0
    %175 = vmatprep.subr.bf16.mxu0 0
    %176 = vmatpush1.bf16.msra.mxu0 0
    %177 = vmatprep.subr.bf16.mxu0 0
    %178 = vmatpush1.bf16.msra.mxu0 0
    %179 = vmatprep.subr.bf16.mxu0 0
    %180 = vmatpush1.bf16.msra.mxu0 0
    %181 = vmatprep.subr.bf16.mxu0 0
    %182 = vmatpush1.bf16.msra.mxu0 0
    %183 = vmatprep.subr.bf16.mxu0 0
    %184 = vmatpush1.bf16.msra.mxu0 0
    %185 = vmatprep.subr.bf16.mxu0 0
    %186 = vmatpush1.bf16.msra.mxu0 0
    %187 = vmatprep.subr.bf16.mxu0 0
    %188 = vmatpush1.bf16.msra.mxu0 0
    %189 = vmatprep.subr.bf16.mxu0 0
    %190 = vmatpush1.bf16.msra.mxu0 0
    %191 = vmatprep.subr.bf16.mxu0 0
    %192 = vmatpush1.bf16.msra.mxu0 0
    %193 = vmatprep.subr.bf16.mxu0 0
    %194 = vmatpush1.bf16.msra.mxu0 0
    %195 = vmatprep.subr.bf16.mxu0 0
    %196 = vmatpush1.bf16.msra.mxu0 0
    %197 = vmatprep.subr.bf16.mxu0 0
    %198 = vmatpush1.bf16.msra.mxu0 0
    %199 = vmatprep.mubr.bf16.mxu0 0
    %200 = vmatmul.mubr.bf16.gmra.mrb[0].mxu0 %v165
    %v201 = vpop.f32.mrb[0].mxu0
    %v202 = vadd.f32 0.0, %v201
    %v203 = vpop.f32.mrb[0].mxu0
    %v204 = vpop.f32.mrb[0].mxu0
    %v205 = vadd.f32 0.0, %v204
    %v206 = vpop.f32.mrb[0].mxu0
    %207 = vdwg.mxu0
    %v208 = vld [vmem:[#allocation7 + $0x1] sm:$0x1]
    %v209 = vpack.c.bf16 %v205, %v202
    %v210 = vpack.c.bf16 %v208, %v208
    %v212 = vpack.i.b16 %v210, %v210
    %v214 = vlaneseq
    %v215 = vshrl.u32 %v214, 7
    %v216 = vsub.s32 0, %v215
    %v217 = vrot.slane %v212, %v216
    %v218 = vadd.bf16 %v209, %v217
    %v219 = vmax.bf16 %v218, 0
    %v220 = vld [vmem:[#allocation5 + $0x30] sm:$0xf]
    %v221 = vld [vmem:[#allocation5 + $0x34] sm:$0xf]
    %v222 = vld [vmem:[#allocation5 + $0x38] sm:$0xf]
    %v223 = vld [vmem:[#allocation5 + $0x3c] sm:$0xf]
    %v228 = vunpack.c.l.b16 %v220
    %v229 = vunpack.c.l.b16 %v221
    %v230 = vunpack.c.l.b16 %v222
    %v231 = vunpack.c.l.b16 %v223
    %v232 = vpack.c.b16 %v229, %v228
    %v233 = vpack.c.b16 %v231, %v230
    %v237 = vsel %vm163, %v219, 0
    %239 = vmatprep.subr.bf16.mxu0 0
    %240 = vmatpush1.bf16.msra.mxu0 %v232
    %241 = vmatprep.subr.bf16.mxu0 0
    %242 = vmatpush1.bf16.msra.mxu0 %v233
    %243 = vmatprep.subr.bf16.mxu0 0
    %244 = vmatpush1.bf16.msra.mxu0 0
    %245 = vmatprep.subr.bf16.mxu0 0
    %246 = vmatpush1.bf16.msra.mxu0 0
    %247 = vmatprep.subr.bf16.mxu0 0
    %248 = vmatpush1.bf16.msra.mxu0 0
    %249 = vmatprep.subr.bf16.mxu0 0
    %250 = vmatpush1.bf16.msra.mxu0 0
    %251 = vmatprep.subr.bf16.mxu0 0
    %252 = vmatpush1.bf16.msra.mxu0 0
    %253 = vmatprep.subr.bf16.mxu0 0
    %254 = vmatpush1.bf16.msra.mxu0 0
    %255 = vmatprep.subr.bf16.mxu0 0
    %256 = vmatpush1.bf16.msra.mxu0 0
    %257 = vmatprep.subr.bf16.mxu0 0
    %258 = vmatpush1.bf16.msra.mxu0 0
    %259 = vmatprep.subr.bf16.mxu0 0
    %260 = vmatpush1.bf16.msra.mxu0 0
    %261 = vmatprep.subr.bf16.mxu0 0
    %262 = vmatpush1.bf16.msra.mxu0 0
    %263 = vmatprep.subr.bf16.mxu0 0
    %264 = vmatpush1.bf16.msra.mxu0 0
    %265 = vmatprep.subr.bf16.mxu0 0
    %266 = vmatpush1.bf16.msra.mxu0 0
    %267 = vmatprep.subr.bf16.mxu0 0
    %268 = vmatpush1.bf16.msra.mxu0 0
    %269 = vmatprep.subr.bf16.mxu0 0
    %270 = vmatpush1.bf16.msra.mxu0 0
    %271 = vmatprep.mubr.bf16.mxu0 0
    %272 = vmatmul.mubr.bf16.gmra.mrb[0].mxu0 %v237
    %v273 = vpop.f32.mrb[0].mxu0
    %v274 = vadd.f32 0.0, %v273
    %v275 = vpop.f32.mrb[0].mxu0
    %v276 = vpop.f32.mrb[0].mxu0
    %v277 = vadd.f32 0.0, %v276
    %v278 = vpop.f32.mrb[0].mxu0
    %279 = vdwg.mxu0
    %v280 = vld [vmem:[#allocation7 + $0x2] sm:$0x1]
    %v281 = vpack.c.bf16 %v277, %v274
    %v282 = vpack.c.bf16 %v280, %v280
    %v284 = vpack.i.b16 %v282, %v282
    %v286 = vlaneseq
    %v287 = vshrl.u32 %v286, 7
    %v288 = vsub.s32 0, %v287
    %v289 = vrot.slane %v284, %v288
    %v290 = vadd.bf16 %v281, %v289
    %v291 = vmax.bf16 %v290, 0
    %v292 = vld [vmem:[#allocation7 + $0x4] sm:$0x1]
    %v293 = vunpack.c.l.bf16 %v291
    %v294 = vunpack.c.h.bf16 %v291
    %v295 = vlaneseq
    %v296 = vshrl.u32 %v295, 7
    %v297 = vsub.s32 0, %v296
    %v298 = vrot.slane %v292, %v297
    %v299 = vmul.f32 %v293, %v298
    %v300 = vmul.f32 %v294, %v298
    %v301 = vsel %vm163, %v299, 0.0
    %302 = vadd.xlane.f32.xlu0 %v301
    %v303 = vpop.xlane.xlu0 %302
    %v304 = vsel %vm163, %v300, 0.0
    %305 = vadd.xlane.f32.xlu0 %v304
    %v306 = vpop.xlane.xlu0 %305
    %v307 = vld [vmem:[#allocation7 + $0x3] sm:$0x1]
    %v308 = vlaneseq
    %v309 = vshrl.u32 %v308, 7
    %v310 = vsub.s32 0, %v309
    %v311 = vrot.slane %v307, %v310
    %v312 = vadd.f32 %v303, %v311
    %v313 = vadd.f32 %v306, %v311
    %vm314 = vcmask 7168
    %315 = vst.msk [vmem:[#allocation8] sm:$0xff] %vm314, %v312
    %316 = vst.msk [vmem:[#allocation8 + $0x8] sm:$0xff] %vm314, %v313
    // Predicated region
    $region26: #{_linear_net_forward_jit.1} parent=1 // pred_check
      _
    $region27: #{_linear_net_forward_jit.1} parent=1 // pred_check_branch
      %318 = sbr.rel (0) target = $region29
    $region28: #{_linear_net_forward_jit.1} parent=1 // pred_region
      %s320 = ssub.s32 256, 128
      %321 = vsyncadd [#allocation4], %s320
      %s322 = sshll.u32 [#allocation8], 4
      %s323 = int_to_ptr.vmem [resolvable:$true] %s322
      %328 = dma.vmem_to_hbm [thread:$0]  %s323, 128, %s3, [#allocation4], 128, 128, 8
    $region29: #{_linear_net_forward_jit.1} parent=1 // pred_fallthru
      _
    // Predicated region
    $region30: #{_linear_net_forward_jit.1} parent=1 // pred_check
      _
    $region31: #{_linear_net_forward_jit.1} parent=1 // pred_check_branch
      %330 = sbr.rel (0) target = $region33
    $region32: #{_linear_net_forward_jit.1} parent=1 // pred_region
      %331 = dma.done [#allocation4], 256
    $region33: #{_linear_net_forward_jit.1} parent=1 // pred_fallthru
      _
    %332 = vsyncpa [#allocation3], 1
    %333 = vsyncpa [#allocation6], 1
    %334 = vsyncpa [#allocation4], 1

</llo_original>
